<compile_context>
chip_gen: v7x
topology: tpu7x:2x2x1
jax: 0.10.0
libtpu: 0.0.40
codegen_flags: <defaults>
</compile_context>

<pallas_src>
import jax
import jax.numpy as jnp
from jax.experimental import pallas as pl
from jax.experimental.pallas import tpu as pltpu


# ---------------------------------------------------------------------------
# Config (small shapes consistent with the module defaults)
# ---------------------------------------------------------------------------
IMAGE_SIZE = (32, 32, 3)      # (H, W, C)
PATCH_SIZE = (16, 16)
EMBED_DIM = 128               # small embed dim (multiple of 128 lanes)
BATCH = 2

H, W, C = IMAGE_SIZE
PH, PW = PATCH_SIZE
NUM_PATCHES = (H // PH) * (W // PW)            # patches_num_detect = 4
PATCH_DIM = (H * W * C) // NUM_PATCHES         # patches_dim_detect = 768

# Batch flattened into the matmul M dimension. One grid step at toy size; for
# real image sizes cap the row tile (multiple of 256 is MXU-friendly on
# v6e/v7x) so the double-buffered x tile stays inside VMEM on every
# generation (v7x: 64 MiB physical / 32 MiB default scoped — set
# vmem_limit_bytes explicitly if TILE_M is pushed past ~2K rows).
M_TOTAL = BATCH * NUM_PATCHES                  # 8
TILE_M = M_TOTAL if M_TOTAL <= 512 else 512
N_STEPS = pl.cdiv(M_TOTAL, TILE_M)             # 1 at toy size


# ---------------------------------------------------------------------------
# Glue: patch splitting (matches split_patches: i over dim1, j over dim2,
# patch content flattened (ph, pw, C) row-major) and sinusoidal pos encoding.
# ---------------------------------------------------------------------------
def split_patches(x):
    # x: (B, H, W, C) float32 in [0, 255]; the /255 is folded into W.
    B = x.shape[0]
    xp = x.reshape(B, H // PH, PH, W // PW, PW, C)
    xp = xp.transpose(0, 1, 3, 2, 4, 5)              # (B, nh, nw, PH, PW, C)
    return xp.reshape(B, NUM_PATCHES, PATCH_DIM)     # (B, P, patch_dim)


def pos_enc(max_len, d_model):
    i = jnp.arange(0, d_model, 2, dtype=jnp.float32)
    d = jnp.power(10000.0, i / d_model)
    pos = jnp.arange(max_len, dtype=jnp.float32).reshape(max_len, 1)
    even = jnp.sin(pos / d)
    odd = jnp.cos(pos / d)
    return jnp.stack([even, odd], axis=-1).reshape(max_len, d_model)


def prepare_params(w, b, pe, batch):
    """One-time algebraic folds, outside the per-call path:
       - (x/255) @ W == x @ (W/255): fold the 1/255 scale into W.
       - bias + positional encoding collapse into one additive term, tiled
         once across the flattened batch -> (B*P, E) (a few KB).
       - W in bf16 halves its HBM traffic; the matmul accumulates in f32."""
    w_scaled = (w * (1.0 / 255.0)).astype(jnp.bfloat16)
    bpe = jnp.tile(pe + b[None, :], (batch, 1)).astype(jnp.float32)   # (B*P, E)
    return w_scaled, bpe


# ---------------------------------------------------------------------------
# Pallas kernel: x @ W_scaled (+ bias-folded PE), MXU matmul with f32 acc.
# ---------------------------------------------------------------------------
def embed_kernel(x_ref, w_ref, bpe_ref, o_ref):
    # x_ref:  (TILE_M, PATCH_DIM) bf16   (batch flattened into M)
    # w_ref:  (PATCH_DIM, EMBED_DIM) bf16 (resident across all grid steps)
    # bpe_ref:(TILE_M, EMBED_DIM) f32    (bias + positional encoding)
    y = jnp.dot(x_ref[...], w_ref[...], preferred_element_type=jnp.float32)
    o_ref[...] = (y + bpe_ref[...]).astype(o_ref.dtype)


def image_embedding(x, w_scaled, bpe):
    """x: (B, H, W, C) f32 in [0, 255]; w_scaled: (patch_dim, E) bf16;
    bpe: (B*P, E) f32 (positional encoding with bias folded in, batch-tiled).
    Returns (B, P, E) f32."""
    B = x.shape[0]
    assert B * NUM_PATCHES == M_TOTAL
    # Patch shuffle + bf16 cast; producer-fusable into the pallas_call input
    # via allow_input_fusion below (no separate launch / HBM round trip).
    xp = split_patches(x).reshape(M_TOTAL, PATCH_DIM).astype(jnp.bfloat16)

    # Weights: constant index_map -> stays resident in VMEM. When the grid
    # actually has >1 step, single-buffer it (double-buffering a constant
    # block only wastes VMEM — matters on v7x's 64 MiB when dims scale).
    if N_STEPS > 1:
        w_spec = pl.BlockSpec((PATCH_DIM, EMBED_DIM), lambda i: (0, 0),
                              pipeline_mode=pl.Buffered(1))
    else:
        w_spec = pl.BlockSpec((PATCH_DIM, EMBED_DIM), lambda i: (0, 0))

    cost = pl.CostEstimate(
        flops=2 * M_TOTAL * PATCH_DIM * EMBED_DIM,
        transcendentals=0,
        bytes_accessed=(xp.size * 2 + w_scaled.size * 2 + bpe.size * 4
                        + M_TOTAL * EMBED_DIM * 4),
    )

    out = pl.pallas_call(
        embed_kernel,
        out_shape=jax.ShapeDtypeStruct((M_TOTAL, EMBED_DIM), jnp.float32),
        grid=(N_STEPS,),
        in_specs=[
            pl.BlockSpec((TILE_M, PATCH_DIM), lambda i: (i, 0)),
            w_spec,
            pl.BlockSpec((TILE_M, EMBED_DIM), lambda i: (i, 0)),
        ],
        out_specs=pl.BlockSpec((TILE_M, EMBED_DIM), lambda i: (i, 0)),
        compiler_params=pltpu.CompilerParams(
            # M-tiles are independent; only pays off once per-core work
            # dominates the ~0.35 us grid-step overhead.
            dimension_semantics=("parallel",),
            # Allow XLA to fuse the patch-shuffle + cast producer of input 0.
            allow_input_fusion=[True, False, False],
        ),
        cost_estimate=cost,
    )(xp, w_scaled, bpe)

    # TODO(synk): nn.Dropout(0.1) is identity in eval mode; not applied here.
    return out.reshape(B, NUM_PATCHES, EMBED_DIM)


# ---------------------------------------------------------------------------
# Pure-JAX float32 reference for correctness check.
# ---------------------------------------------------------------------------
def reference(x, w, b, pe):
    xm = split_patches(x) / 255.0
    return xm @ w + b + pe[None, :, :]


if __name__ == "__main__":
    key = jax.random.PRNGKey(0)
    k_img, k_w, k_b = jax.random.split(key, 3)

    # Deterministic "image" in [0, 255] and Linear params (PyTorch-style init).
    x = jax.random.uniform(k_img, (BATCH, H, W, C), jnp.float32, 0.0, 255.0)
    bound = 1.0 / (PATCH_DIM ** 0.5)
    w = jax.random.uniform(k_w, (PATCH_DIM, EMBED_DIM), jnp.float32,
                           -bound, bound)
    b = jax.random.uniform(k_b, (EMBED_DIM,), jnp.float32, -bound, bound)
    pe = pos_enc(NUM_PATCHES, EMBED_DIM)

    # One-time parameter folds (scale into W, bias into PE, batch tile, bf16).
    w_scaled, bpe = prepare_params(w, b, pe, BATCH)

    out = jax.jit(image_embedding)(x, w_scaled, bpe)
    out = jax.block_until_ready(out)

    ref = reference(x, w, b, pe)
    assert out.shape == (BATCH, NUM_PATCHES, EMBED_DIM), out.shape
    # bf16 weights/activations with f32 accumulation -> loosened tolerance.
    assert jnp.allclose(out, ref, atol=2e-2, rtol=2e-2), \
        float(jnp.max(jnp.abs(out - ref)))

    print("KERNEL_OK")
</pallas_src>

<mosaic_0001>
module attributes {stable_mosaic.version = 11 : i64} {
  func.func @embed_kernel(%arg0: i32, %arg1: memref<8x768xbf16, #tpu.memory_space<vmem>>, %arg2: memref<768x128xbf16, #tpu.memory_space<vmem>>, %arg3: memref<8x128xf32, #tpu.memory_space<vmem>>, %arg4: memref<8x128xf32, #tpu.memory_space<vmem>>) attributes {dimension_semantics = [#tpu.dimension_semantics<parallel>], iteration_bounds = array<i64: 1>, scalar_prefetch = 0 : i64, scratch_operands = 0 : i64, tpu.core_type = #tpu.core_type<tc>, window_params = [{transform_indices = @transform_0, window_bounds = array<i64: 8, 768>}, {pipeline_mode = #tpu.pipeline_mode<synchronous>, transform_indices = @transform_1, window_bounds = array<i64: 768, 128>}, {transform_indices = @transform_2, window_bounds = array<i64: 8, 128>}, {transform_indices = @transform_3, window_bounds = array<i64: 8, 128>}]} {
    %c0 = arith.constant 0 : index
    %c0_0 = arith.constant 0 : index
    %0 = vector.load %arg1[%c0, %c0_0] : memref<8x768xbf16, #tpu.memory_space<vmem>>, vector<8x768xbf16>
    %c0_1 = arith.constant 0 : index
    %c0_2 = arith.constant 0 : index
    %1 = vector.load %arg2[%c0_1, %c0_2] : memref<768x128xbf16, #tpu.memory_space<vmem>>, vector<768x128xbf16>
    %cst = arith.constant dense<0.000000e+00> : vector<8x128xf32>
    %2 = tpu.matmul %0, %1, %cst {dimension_numbers = #tpu.dot_dimension_numbers<[1], [0], [0], [1], [0, 0, 1, 1], [], []>} : vector<8x768xbf16>, vector<768x128xbf16>, vector<8x128xf32> -> vector<8x128xf32>
    %c0_3 = arith.constant 0 : index
    %c0_4 = arith.constant 0 : index
    %3 = vector.load %arg3[%c0_3, %c0_4] : memref<8x128xf32, #tpu.memory_space<vmem>>, vector<8x128xf32>
    %4 = arith.addf %2, %3 : vector<8x128xf32>
    %c0_5 = arith.constant 0 : index
    %c0_6 = arith.constant 0 : index
    %5 = vector.load %arg4[%c0_5, %c0_6] : memref<8x128xf32, #tpu.memory_space<vmem>>, vector<8x128xf32>
    tpu.vector_store %arg4[%c0_5, %c0_6], %4 {strides = array<i32>} : memref<8x128xf32, #tpu.memory_space<vmem>>, vector<8x128xf32>,
    return
  }
  func.func @transform_0(%arg0: i32) -> (i32, i32) {
    %c0_i32 = arith.constant 0 : i32
    %c0_i32_0 = arith.constant 0 : i32
    return %arg0, %c0_i32 : i32, i32
  }
  func.func @transform_1(%arg0: i32) -> (i32, i32) {
    %c0_i32 = arith.constant 0 : i32
    %c0_i32_0 = arith.constant 0 : i32
    %c0_i32_1 = arith.constant 0 : i32
    return %c0_i32, %c0_i32_0 : i32, i32
  }
  func.func @transform_2(%arg0: i32) -> (i32, i32) {
    %c0_i32 = arith.constant 0 : i32
    %c0_i32_0 = arith.constant 0 : i32
    return %arg0, %c0_i32 : i32, i32
  }
  func.func @transform_3(%arg0: i32) -> (i32, i32) {
    %c0_i32 = arith.constant 0 : i32
    %c0_i32_0 = arith.constant 0 : i32
    return %arg0, %c0_i32 : i32, i32
  }
}

</mosaic_0001>

<llo_original>
// kernel: image_embedding.1
$region0: #{image_embedding.1}
  #allocation0 [shape = 'u32[]', space=smem, size = 0x4, offset = 0x4, fixed_abs, tag = 'smem constant byte address 0x4 - core index']
  #allocation1 [shape = 'u32[144,128]{1,0:T(1,128)}', space=vmem, size = 0x12000, scoped, tag = 'internal scratch']
  %s0 = inlined_call_operand.vmem [shape: bf16[8,768], index: 0, kind: input, shape index: {}]
  %s1 = inlined_call_operand.vmem [shape: bf16[768,128], index: 1, kind: input, shape index: {}]
  %s2 = inlined_call_operand.vmem [shape: f32[8,128], index: 2, kind: input, shape index: {}]
  %s3 = inlined_call_operand.hbm [shape: f32[8,128], index: 3, kind: output, shape index: {}]
  %s4 = sld [smem:[#allocation0]]
  $region22: #{image_embedding.1} parent=0
    _
  %s6 = ssub.s32 1, %s4
  %s7 = scalar_select 0, %s6, %s4
  $region1: #{image_embedding.1} parent=0
    #allocation2 [shape = 'u8[4096]{0}', space=vmem, size = 0x1000, scoped, tag = 'output window, operand 0, single buffered']
    #allocation3 [shape = 's32[1]{0}', space=sflag, size = 0x4, scoped, tag = 'scoped memory for image_embedding.1']
    %8 = vsyncpa [#allocation3], 0
    // Predicated region
    $region2: #{image_embedding.1} parent=1 // pred_check
      _
    $region3: #{image_embedding.1} parent=1 // pred_check_branch
      %10 = sbr.rel (0) target = $region5
    $region4: #{image_embedding.1} parent=1 // pred_region
      _
    $region5: #{image_embedding.1} parent=1 // pred_fallthru
      _
    // Predicated region
    $region6: #{image_embedding.1} parent=1 // pred_check
      _
    $region7: #{image_embedding.1} parent=1 // pred_check_branch
      %12 = sbr.rel (0) target = $region9
    $region8: #{image_embedding.1} parent=1 // pred_region
      _
    $region9: #{image_embedding.1} parent=1 // pred_fallthru
      _
    // Predicated region
    $region10: #{image_embedding.1} parent=1 // pred_check
      _
    $region11: #{image_embedding.1} parent=1 // pred_check_branch
      %14 = sbr.rel (0) target = $region13
    $region12: #{image_embedding.1} parent=1 // pred_region
      _
    $region13: #{image_embedding.1} parent=1 // pred_fallthru
      _
    %v16 = vld [vmem:[%s0] sm:$0xff]
    %v17 = vld [vmem:[%s0 + $0x8] sm:$0xff]
    %v18 = vld [vmem:[%s0 + $0x10] sm:$0xff]
    %v19 = vld [vmem:[%s1] sm:$0xf]
    %v20 = vld [vmem:[%s1 + $0x4] sm:$0xf]
    %v21 = vld [vmem:[%s1 + $0x8] sm:$0xf]
    %v22 = vld [vmem:[%s1 + $0xc] sm:$0xf]
    %v23 = vld [vmem:[%s1 + $0x10] sm:$0xf]
    %v24 = vld [vmem:[%s1 + $0x14] sm:$0xf]
    %v25 = vld [vmem:[%s1 + $0x18] sm:$0xf]
    %v26 = vld [vmem:[%s1 + $0x1c] sm:$0xf]
    %v27 = vld [vmem:[%s1 + $0x20] sm:$0xf]
    %v28 = vld [vmem:[%s1 + $0x24] sm:$0xf]
    %v29 = vld [vmem:[%s1 + $0x28] sm:$0xf]
    %v30 = vld [vmem:[%s1 + $0x2c] sm:$0xf]
    %v31 = vld [vmem:[%s1 + $0x30] sm:$0xf]
    %v32 = vld [vmem:[%s1 + $0x34] sm:$0xf]
    %v33 = vld [vmem:[%s1 + $0x38] sm:$0xf]
    %v34 = vld [vmem:[%s1 + $0x3c] sm:$0xf]
    %v35 = vld [vmem:[%s1 + $0x40] sm:$0xf]
    %v36 = vld [vmem:[%s1 + $0x44] sm:$0xf]
    %v37 = vld [vmem:[%s1 + $0x48] sm:$0xf]
    %v38 = vld [vmem:[%s1 + $0x4c] sm:$0xf]
    %v39 = vld [vmem:[%s1 + $0x50] sm:$0xf]
    %v40 = vld [vmem:[%s1 + $0x54] sm:$0xf]
    %v41 = vld [vmem:[%s1 + $0x58] sm:$0xf]
    %v42 = vld [vmem:[%s1 + $0x5c] sm:$0xf]
    %v43 = vld [vmem:[%s1 + $0x60] sm:$0xf]
    %v44 = vld [vmem:[%s1 + $0x64] sm:$0xf]
    %v45 = vld [vmem:[%s1 + $0x68] sm:$0xf]
    %v46 = vld [vmem:[%s1 + $0x6c] sm:$0xf]
    %v47 = vld [vmem:[%s1 + $0x70] sm:$0xf]
    %v48 = vld [vmem:[%s1 + $0x74] sm:$0xf]
    %v49 = vld [vmem:[%s1 + $0x78] sm:$0xf]
    %v50 = vld [vmem:[%s1 + $0x7c] sm:$0xf]
    %v51 = vld [vmem:[%s1 + $0x80] sm:$0xf]
    %v52 = vld [vmem:[%s1 + $0x84] sm:$0xf]
    %v53 = vld [vmem:[%s1 + $0x88] sm:$0xf]
    %v54 = vld [vmem:[%s1 + $0x8c] sm:$0xf]
    %v55 = vld [vmem:[%s1 + $0x90] sm:$0xf]
    %v56 = vld [vmem:[%s1 + $0x94] sm:$0xf]
    %v57 = vld [vmem:[%s1 + $0x98] sm:$0xf]
    %v58 = vld [vmem:[%s1 + $0x9c] sm:$0xf]
    %v59 = vld [vmem:[%s1 + $0xa0] sm:$0xf]
    %v60 = vld [vmem:[%s1 + $0xa4] sm:$0xf]
    %v61 = vld [vmem:[%s1 + $0xa8] sm:$0xf]
    %v62 = vld [vmem:[%s1 + $0xac] sm:$0xf]
    %v63 = vld [vmem:[%s1 + $0xb0] sm:$0xf]
    %v64 = vld [vmem:[%s1 + $0xb4] sm:$0xf]
    %v65 = vld [vmem:[%s1 + $0xb8] sm:$0xf]
    %v66 = vld [vmem:[%s1 + $0xbc] sm:$0xf]
    %v67 = vld [vmem:[%s1 + $0xc0] sm:$0xf]
    %v68 = vld [vmem:[%s1 + $0xc4] sm:$0xf]
    %v69 = vld [vmem:[%s1 + $0xc8] sm:$0xf]
    %v70 = vld [vmem:[%s1 + $0xcc] sm:$0xf]
    %v71 = vld [vmem:[%s1 + $0xd0] sm:$0xf]
    %v72 = vld [vmem:[%s1 + $0xd4] sm:$0xf]
    %v73 = vld [vmem:[%s1 + $0xd8] sm:$0xf]
    %v74 = vld [vmem:[%s1 + $0xdc] sm:$0xf]
    %v75 = vld [vmem:[%s1 + $0xe0] sm:$0xf]
    %v76 = vld [vmem:[%s1 + $0xe4] sm:$0xf]
    %v77 = vld [vmem:[%s1 + $0xe8] sm:$0xf]
    %v78 = vld [vmem:[%s1 + $0xec] sm:$0xf]
    %v79 = vld [vmem:[%s1 + $0xf0] sm:$0xf]
    %v80 = vld [vmem:[%s1 + $0xf4] sm:$0xf]
    %v81 = vld [vmem:[%s1 + $0xf8] sm:$0xf]
    %v82 = vld [vmem:[%s1 + $0xfc] sm:$0xf]
    %v83 = vld [vmem:[%s1 + $0x100] sm:$0xf]
    %v84 = vld [vmem:[%s1 + $0x104] sm:$0xf]
    %v85 = vld [vmem:[%s1 + $0x108] sm:$0xf]
    %v86 = vld [vmem:[%s1 + $0x10c] sm:$0xf]
    %v87 = vld [vmem:[%s1 + $0x110] sm:$0xf]
    %v88 = vld [vmem:[%s1 + $0x114] sm:$0xf]
    %v89 = vld [vmem:[%s1 + $0x118] sm:$0xf]
    %v90 = vld [vmem:[%s1 + $0x11c] sm:$0xf]
    %v91 = vld [vmem:[%s1 + $0x120] sm:$0xf]
    %v92 = vld [vmem:[%s1 + $0x124] sm:$0xf]
    %v93 = vld [vmem:[%s1 + $0x128] sm:$0xf]
    %v94 = vld [vmem:[%s1 + $0x12c] sm:$0xf]
    %v95 = vld [vmem:[%s1 + $0x130] sm:$0xf]
    %v96 = vld [vmem:[%s1 + $0x134] sm:$0xf]
    %v97 = vld [vmem:[%s1 + $0x138] sm:$0xf]
    %v98 = vld [vmem:[%s1 + $0x13c] sm:$0xf]
    %v99 = vld [vmem:[%s1 + $0x140] sm:$0xf]
    %v100 = vld [vmem:[%s1 + $0x144] sm:$0xf]
    %v101 = vld [vmem:[%s1 + $0x148] sm:$0xf]
    %v102 = vld [vmem:[%s1 + $0x14c] sm:$0xf]
    %v103 = vld [vmem:[%s1 + $0x150] sm:$0xf]
    %v104 = vld [vmem:[%s1 + $0x154] sm:$0xf]
    %v105 = vld [vmem:[%s1 + $0x158] sm:$0xf]
    %v106 = vld [vmem:[%s1 + $0x15c] sm:$0xf]
    %v107 = vld [vmem:[%s1 + $0x160] sm:$0xf]
    %v108 = vld [vmem:[%s1 + $0x164] sm:$0xf]
    %v109 = vld [vmem:[%s1 + $0x168] sm:$0xf]
    %v110 = vld [vmem:[%s1 + $0x16c] sm:$0xf]
    %v111 = vld [vmem:[%s1 + $0x170] sm:$0xf]
    %v112 = vld [vmem:[%s1 + $0x174] sm:$0xf]
    %v113 = vld [vmem:[%s1 + $0x178] sm:$0xf]
    %v114 = vld [vmem:[%s1 + $0x17c] sm:$0xf]
    %v115 = vld [vmem:[%s2] sm:$0xff]
    %v119 = vunpack.c.l.b16 %v16
    %v120 = vunpack.c.h.b16 %v16
    %v121 = vunpack.c.l.b16 %v17
    %v122 = vunpack.c.h.b16 %v17
    %v123 = vunpack.c.l.b16 %v18
    %v124 = vunpack.c.h.b16 %v18
    %v125 = vpack.c.b16 %v119, %v119
    %v126 = vpack.c.b16 %v120, %v120
    %v127 = vpack.c.b16 %v121, %v121
    %v128 = vpack.c.b16 %v122, %v122
    %v129 = vpack.c.b16 %v123, %v123
    %v130 = vpack.c.b16 %v124, %v124
    %v233 = vunpack.c.l.b16 %v19
    %v234 = vunpack.c.l.b16 %v20
    %v235 = vunpack.c.l.b16 %v21
    %v236 = vunpack.c.l.b16 %v22
    %v237 = vunpack.c.l.b16 %v23
    %v238 = vunpack.c.l.b16 %v24
    %v239 = vunpack.c.l.b16 %v25
    %v240 = vunpack.c.l.b16 %v26
    %v241 = vunpack.c.l.b16 %v27
    %v242 = vunpack.c.l.b16 %v28
    %v243 = vunpack.c.l.b16 %v29
    %v244 = vunpack.c.l.b16 %v30
    %v245 = vunpack.c.l.b16 %v31
    %v246 = vunpack.c.l.b16 %v32
    %v247 = vunpack.c.l.b16 %v33
    %v248 = vunpack.c.l.b16 %v34
    %v249 = vunpack.c.l.b16 %v35
    %v250 = vunpack.c.l.b16 %v36
    %v251 = vunpack.c.l.b16 %v37
    %v252 = vunpack.c.l.b16 %v38
    %v253 = vunpack.c.l.b16 %v39
    %v254 = vunpack.c.l.b16 %v40
    %v255 = vunpack.c.l.b16 %v41
    %v256 = vunpack.c.l.b16 %v42
    %v257 = vunpack.c.l.b16 %v43
    %v258 = vunpack.c.l.b16 %v44
    %v259 = vunpack.c.l.b16 %v45
    %v260 = vunpack.c.l.b16 %v46
    %v261 = vunpack.c.l.b16 %v47
    %v262 = vunpack.c.l.b16 %v48
    %v263 = vunpack.c.l.b16 %v49
    %v264 = vunpack.c.l.b16 %v50
    %v265 = vunpack.c.l.b16 %v51
    %v266 = vunpack.c.l.b16 %v52
    %v267 = vunpack.c.l.b16 %v53
    %v268 = vunpack.c.l.b16 %v54
    %v269 = vunpack.c.l.b16 %v55
    %v270 = vunpack.c.l.b16 %v56
    %v271 = vunpack.c.l.b16 %v57
    %v272 = vunpack.c.l.b16 %v58
    %v273 = vunpack.c.l.b16 %v59
    %v274 = vunpack.c.l.b16 %v60
    %v275 = vunpack.c.l.b16 %v61
    %v276 = vunpack.c.l.b16 %v62
    %v277 = vunpack.c.l.b16 %v63
    %v278 = vunpack.c.l.b16 %v64
    %v279 = vunpack.c.l.b16 %v65
    %v280 = vunpack.c.l.b16 %v66
    %v281 = vunpack.c.l.b16 %v67
    %v282 = vunpack.c.l.b16 %v68
    %v283 = vunpack.c.l.b16 %v69
    %v284 = vunpack.c.l.b16 %v70
    %v285 = vunpack.c.l.b16 %v71
    %v286 = vunpack.c.l.b16 %v72
    %v287 = vunpack.c.l.b16 %v73
    %v288 = vunpack.c.l.b16 %v74
    %v289 = vunpack.c.l.b16 %v75
    %v290 = vunpack.c.l.b16 %v76
    %v291 = vunpack.c.l.b16 %v77
    %v292 = vunpack.c.l.b16 %v78
    %v293 = vunpack.c.l.b16 %v79
    %v294 = vunpack.c.l.b16 %v80
    %v295 = vunpack.c.l.b16 %v81
    %v296 = vunpack.c.l.b16 %v82
    %v297 = vunpack.c.l.b16 %v83
    %v298 = vunpack.c.l.b16 %v84
    %v299 = vunpack.c.l.b16 %v85
    %v300 = vunpack.c.l.b16 %v86
    %v301 = vunpack.c.l.b16 %v87
    %v302 = vunpack.c.l.b16 %v88
    %v303 = vunpack.c.l.b16 %v89
    %v304 = vunpack.c.l.b16 %v90
    %v305 = vunpack.c.l.b16 %v91
    %v306 = vunpack.c.l.b16 %v92
    %v307 = vunpack.c.l.b16 %v93
    %v308 = vunpack.c.l.b16 %v94
    %v309 = vunpack.c.l.b16 %v95
    %v310 = vunpack.c.l.b16 %v96
    %v311 = vunpack.c.l.b16 %v97
    %v312 = vunpack.c.l.b16 %v98
    %v313 = vunpack.c.l.b16 %v99
    %v314 = vunpack.c.l.b16 %v100
    %v315 = vunpack.c.l.b16 %v101
    %v316 = vunpack.c.l.b16 %v102
    %v317 = vunpack.c.l.b16 %v103
    %v318 = vunpack.c.l.b16 %v104
    %v319 = vunpack.c.l.b16 %v105
    %v320 = vunpack.c.l.b16 %v106
    %v321 = vunpack.c.l.b16 %v107
    %v322 = vunpack.c.l.b16 %v108
    %v323 = vunpack.c.l.b16 %v109
    %v324 = vunpack.c.l.b16 %v110
    %v325 = vunpack.c.l.b16 %v111
    %v326 = vunpack.c.l.b16 %v112
    %v327 = vunpack.c.l.b16 %v113
    %v328 = vunpack.c.l.b16 %v114
    %v329 = vpack.c.b16 %v234, %v233
    %v330 = vpack.c.b16 %v236, %v235
    %v331 = vpack.c.b16 %v238, %v237
    %v332 = vpack.c.b16 %v240, %v239
    %v333 = vpack.c.b16 %v242, %v241
    %v334 = vpack.c.b16 %v244, %v243
    %v335 = vpack.c.b16 %v246, %v245
    %v336 = vpack.c.b16 %v248, %v247
    %v337 = vpack.c.b16 %v250, %v249
    %v338 = vpack.c.b16 %v252, %v251
    %v339 = vpack.c.b16 %v254, %v253
    %v340 = vpack.c.b16 %v256, %v255
    %v341 = vpack.c.b16 %v258, %v257
    %v342 = vpack.c.b16 %v260, %v259
    %v343 = vpack.c.b16 %v262, %v261
    %v344 = vpack.c.b16 %v264, %v263
    %v345 = vpack.c.b16 %v266, %v265
    %v346 = vpack.c.b16 %v268, %v267
    %v347 = vpack.c.b16 %v270, %v269
    %v348 = vpack.c.b16 %v272, %v271
    %v349 = vpack.c.b16 %v274, %v273
    %v350 = vpack.c.b16 %v276, %v275
    %v351 = vpack.c.b16 %v278, %v277
    %v352 = vpack.c.b16 %v280, %v279
    %v353 = vpack.c.b16 %v282, %v281
    %v354 = vpack.c.b16 %v284, %v283
    %v355 = vpack.c.b16 %v286, %v285
    %v356 = vpack.c.b16 %v288, %v287
    %v357 = vpack.c.b16 %v290, %v289
    %v358 = vpack.c.b16 %v292, %v291
    %v359 = vpack.c.b16 %v294, %v293
    %v360 = vpack.c.b16 %v296, %v295
    %v361 = vpack.c.b16 %v298, %v297
    %v362 = vpack.c.b16 %v300, %v299
    %v363 = vpack.c.b16 %v302, %v301
    %v364 = vpack.c.b16 %v304, %v303
    %v365 = vpack.c.b16 %v306, %v305
    %v366 = vpack.c.b16 %v308, %v307
    %v367 = vpack.c.b16 %v310, %v309
    %v368 = vpack.c.b16 %v312, %v311
    %v369 = vpack.c.b16 %v314, %v313
    %v370 = vpack.c.b16 %v316, %v315
    %v371 = vpack.c.b16 %v318, %v317
    %v372 = vpack.c.b16 %v320, %v319
    %v373 = vpack.c.b16 %v322, %v321
    %v374 = vpack.c.b16 %v324, %v323
    %v375 = vpack.c.b16 %v326, %v325
    %v376 = vpack.c.b16 %v328, %v327
    %425 = vmatprep.subr.bf16.mxu0 0
    %426 = vmatpush1.bf16.msra.mxu0 %v329
    %427 = vmatprep.subr.bf16.mxu0 0
    %428 = vmatpush1.bf16.msra.mxu0 %v330
    %429 = vmatprep.subr.bf16.mxu0 0
    %430 = vmatpush1.bf16.msra.mxu0 %v331
    %431 = vmatprep.subr.bf16.mxu0 0
    %432 = vmatpush1.bf16.msra.mxu0 %v332
    %433 = vmatprep.subr.bf16.mxu0 0
    %434 = vmatpush1.bf16.msra.mxu0 %v333
    %435 = vmatprep.subr.bf16.mxu0 0
    %436 = vmatpush1.bf16.msra.mxu0 %v334
    %437 = vmatprep.subr.bf16.mxu0 0
    %438 = vmatpush1.bf16.msra.mxu0 %v335
    %439 = vmatprep.subr.bf16.mxu0 0
    %440 = vmatpush1.bf16.msra.mxu0 %v336
    %441 = vmatprep.subr.bf16.mxu0 0
    %442 = vmatpush1.bf16.msra.mxu0 %v337
    %443 = vmatprep.subr.bf16.mxu0 0
    %444 = vmatpush1.bf16.msra.mxu0 %v338
    %445 = vmatprep.subr.bf16.mxu0 0
    %446 = vmatpush1.bf16.msra.mxu0 %v339
    %447 = vmatprep.subr.bf16.mxu0 0
    %448 = vmatpush1.bf16.msra.mxu0 %v340
    %449 = vmatprep.subr.bf16.mxu0 0
    %450 = vmatpush1.bf16.msra.mxu0 %v341
    %451 = vmatprep.subr.bf16.mxu0 0
    %452 = vmatpush1.bf16.msra.mxu0 %v342
    %453 = vmatprep.subr.bf16.mxu0 0
    %454 = vmatpush1.bf16.msra.mxu0 %v343
    %455 = vmatprep.subr.bf16.mxu0 0
    %456 = vmatpush1.bf16.msra.mxu0 %v344
    %457 = vmatprep.mubr.bf16.mxu0 %v126
    %458 = vmatmul.mubr.bf16.gmra.mrb[0].mxu0 %v125
    %v459 = vpop.f32.mrb[0].mxu0
    %v460 = vadd.f32 %v115, %v459
    %v461 = vpop.f32.mrb[0].mxu0
    %v462 = vpop.f32.mrb[0].mxu0
    %v463 = vpop.f32.mrb[0].mxu0
    %464 = vdwg.mxu0
    %465 = vmatprep.subr.bf16.mxu0 0
    %466 = vmatpush1.bf16.msra.mxu0 %v345
    %467 = vmatprep.subr.bf16.mxu0 0
    %468 = vmatpush1.bf16.msra.mxu0 %v346
    %469 = vmatprep.subr.bf16.mxu0 0
    %470 = vmatpush1.bf16.msra.mxu0 %v347
    %471 = vmatprep.subr.bf16.mxu0 0
    %472 = vmatpush1.bf16.msra.mxu0 %v348
    %473 = vmatprep.subr.bf16.mxu0 0
    %474 = vmatpush1.bf16.msra.mxu0 %v349
    %475 = vmatprep.subr.bf16.mxu0 0
    %476 = vmatpush1.bf16.msra.mxu0 %v350
    %477 = vmatprep.subr.bf16.mxu0 0
    %478 = vmatpush1.bf16.msra.mxu0 %v351
    %479 = vmatprep.subr.bf16.mxu0 0
    %480 = vmatpush1.bf16.msra.mxu0 %v352
    %481 = vmatprep.subr.bf16.mxu0 0
    %482 = vmatpush1.bf16.msra.mxu0 %v353
    %483 = vmatprep.subr.bf16.mxu0 0
    %484 = vmatpush1.bf16.msra.mxu0 %v354
    %485 = vmatprep.subr.bf16.mxu0 0
    %486 = vmatpush1.bf16.msra.mxu0 %v355
    %487 = vmatprep.subr.bf16.mxu0 0
    %488 = vmatpush1.bf16.msra.mxu0 %v356
    %489 = vmatprep.subr.bf16.mxu0 0
    %490 = vmatpush1.bf16.msra.mxu0 %v357
    %491 = vmatprep.subr.bf16.mxu0 0
    %492 = vmatpush1.bf16.msra.mxu0 %v358
    %493 = vmatprep.subr.bf16.mxu0 0
    %494 = vmatpush1.bf16.msra.mxu0 %v359
    %495 = vmatprep.subr.bf16.mxu0 0
    %496 = vmatpush1.bf16.msra.mxu0 %v360
    %497 = vmatprep.mubr.bf16.mxu0 %v128
    %498 = vmatmul.mubr.bf16.gmra.mrb[0].mxu0 %v127
    %v499 = vpop.f32.mrb[0].mxu0
    %v500 = vadd.f32 %v460, %v499
    %v501 = vpop.f32.mrb[0].mxu0
    %v502 = vpop.f32.mrb[0].mxu0
    %v503 = vpop.f32.mrb[0].mxu0
    %504 = vdwg.mxu0
    %505 = vmatprep.subr.bf16.mxu0 0
    %506 = vmatpush1.bf16.msra.mxu0 %v361
    %507 = vmatprep.subr.bf16.mxu0 0
    %508 = vmatpush1.bf16.msra.mxu0 %v362
    %509 = vmatprep.subr.bf16.mxu0 0
    %510 = vmatpush1.bf16.msra.mxu0 %v363
    %511 = vmatprep.subr.bf16.mxu0 0
    %512 = vmatpush1.bf16.msra.mxu0 %v364
    %513 = vmatprep.subr.bf16.mxu0 0
    %514 = vmatpush1.bf16.msra.mxu0 %v365
    %515 = vmatprep.subr.bf16.mxu0 0
    %516 = vmatpush1.bf16.msra.mxu0 %v366
    %517 = vmatprep.subr.bf16.mxu0 0
    %518 = vmatpush1.bf16.msra.mxu0 %v367
    %519 = vmatprep.subr.bf16.mxu0 0
    %520 = vmatpush1.bf16.msra.mxu0 %v368
    %521 = vmatprep.subr.bf16.mxu0 0
    %522 = vmatpush1.bf16.msra.mxu0 %v369
    %523 = vmatprep.subr.bf16.mxu0 0
    %524 = vmatpush1.bf16.msra.mxu0 %v370
    %525 = vmatprep.subr.bf16.mxu0 0
    %526 = vmatpush1.bf16.msra.mxu0 %v371
    %527 = vmatprep.subr.bf16.mxu0 0
    %528 = vmatpush1.bf16.msra.mxu0 %v372
    %529 = vmatprep.subr.bf16.mxu0 0
    %530 = vmatpush1.bf16.msra.mxu0 %v373
    %531 = vmatprep.subr.bf16.mxu0 0
    %532 = vmatpush1.bf16.msra.mxu0 %v374
    %533 = vmatprep.subr.bf16.mxu0 0
    %534 = vmatpush1.bf16.msra.mxu0 %v375
    %535 = vmatprep.subr.bf16.mxu0 0
    %536 = vmatpush1.bf16.msra.mxu0 %v376
    %537 = vmatprep.mubr.bf16.mxu0 %v130
    %538 = vmatmul.mubr.bf16.gmra.mrb[0].mxu0 %v129
    %v539 = vpop.f32.mrb[0].mxu0
    %v540 = vadd.f32 %v500, %v539
    %v541 = vpop.f32.mrb[0].mxu0
    %v542 = vpop.f32.mrb[0].mxu0
    %v543 = vpop.f32.mrb[0].mxu0
    %544 = vdwg.mxu0
    %545 = vst [vmem:[#allocation2] sm:$0xff] %v540
    // Predicated region
    $region14: #{image_embedding.1} parent=1 // pred_check
      _
    $region15: #{image_embedding.1} parent=1 // pred_check_branch
      %547 = sbr.rel (0) target = $region17
    $region16: #{image_embedding.1} parent=1 // pred_region
      %s549 = ssub.s32 128, 128
      %550 = vsyncadd [#allocation3], %s549
      %s552 = sshll.u32 [#allocation2], 4
      %s553 = int_to_ptr.vmem [resolvable:$true] %s552
      %555 = dma.vmem_to_hbm [thread:$0]  %s553, 128, %s3, [#allocation3]
    $region17: #{image_embedding.1} parent=1 // pred_fallthru
      _
    // Predicated region
    $region18: #{image_embedding.1} parent=1 // pred_check
      _
    $region19: #{image_embedding.1} parent=1 // pred_check_branch
      %557 = sbr.rel (0) target = $region21
    $region20: #{image_embedding.1} parent=1 // pred_region
      %558 = dma.done [#allocation3], 128
    $region21: #{image_embedding.1} parent=1 // pred_fallthru
      _
    %559 = vsyncpa [#allocation3], 1

</llo_original>
